<compile_context>
chip_gen: v7x
topology: tpu7x:2x2x1
jax: 0.10.0
libtpu: 0.0.40
codegen_flags: <defaults>
</compile_context>

<pallas_src>
import functools

import jax
import jax.numpy as jnp
from jax.experimental import pallas as pl
from jax.experimental.pallas import tpu as pltpu


# ---------------------------------------------------------------------------
# VMEM budgeting (generation-aware, with a conservative fallback)
# ---------------------------------------------------------------------------
def _vmem_budget():
    cap = None
    try:
        info = pltpu.get_tpu_info()
        for name in ("vmem_capacity_bytes", "vmem_size_bytes", "vmem_bytes"):
            v = getattr(info, name, None)
            if v:
                cap = int(v)
                break
    except Exception:
        cap = None
    if not cap:
        cap = 64 << 20                      # conservative: v7x per-TensorCore VMEM
    # ~3/4 of physical for this kernel (headroom for compiler-internal scratch),
    # capped at 96 MiB (v5e/v6e, 128 MiB physical) and never below 32 MiB.
    limit = max(32 << 20, min((cap * 3) // 4, 96 << 20))
    return cap, limit


# ---------------------------------------------------------------------------
# Kernel 1: implicit-GEMM conv + per-(batch, row-tile) partial BatchNorm stats
# ---------------------------------------------------------------------------
def _conv_stats_kernel(x_ref, w_ref, y_ref, sum_ref, ssq_ref, *scratch,
                       toeplitz, manual_dma, kh, kw, stride, th, ow, oh,
                       c_in, c_out, needs_mask):
    t = pl.program_id(1)

    if manual_dma:
        # Row window (with halo) straight from HBM into VMEM scratch.
        # TODO(synk): add cross-step double-buffered prefetch on this path (mark the
        # row-tile axis "arbitrary") to overlap the input DMA with compute.
        b = pl.program_id(0)
        xbuf = scratch[0]
        pltpu.sync_copy(x_ref.at[b, pl.ds(t * th * stride, xbuf.shape[0])], xbuf)
        xsrc = xbuf
    else:
        xsrc = x_ref

    if toeplitz:
        # kx taps + input channels fused into the contraction via a banded Toeplitz
        # weight: one (TH, WP*C_in) @ (WP*C_in, OW*C_out) MXU matmul per kernel row.
        # Accumulator and the conv output stay lane-dense (OW*C_out columns).
        acc = jnp.zeros((th, ow * c_out), jnp.float32)
        for ky in range(kh):
            a = xsrc[ky:ky + th, :]                       # (TH, WP*C_in) bf16
            acc = acc + jnp.dot(a, w_ref[ky], preferred_element_type=jnp.float32)
    else:
        # General fallback: per-tap matmuls with K = C_in (dense on the MXU once
        # C_in >= 128; also used for stride > 1).
        rows = th * ow
        acc = jnp.zeros((rows, c_out), jnp.float32)
        for ky in range(kh):
            for kx in range(kw):
                if stride == 1:
                    win = xsrc[ky:ky + th, kx:kx + ow, :]
                else:
                    # TODO(synk): a one-time space-to-depth phase split in the wrapper
                    # would avoid these strided window reads for stride > 1.
                    win = xsrc[pl.ds(ky, th, stride=stride),
                               pl.ds(kx, ow, stride=stride), :]
                acc = acc + jnp.dot(win.reshape(rows, c_in), w_ref[ky * kw + kx],
                                    preferred_element_type=jnp.float32)

    y_ref[...] = acc.astype(y_ref.dtype)

    # Partial (per batch, per row-tile) statistics -> no resident accumulator, both
    # grid axes stay "parallel".  Mask only traces when the row tiling is ragged.
    if needs_mask:
        gidx = jax.lax.broadcasted_iota(jnp.int32, acc.shape, 0)
        if not toeplitz:
            gidx = gidx // ow
        acc_m = jnp.where(t * th + gidx < oh, acc, 0.0)
    else:
        acc_m = acc
    ps = jnp.sum(acc_m, axis=0, keepdims=True)
    pq = jnp.sum(acc_m * acc_m, axis=0, keepdims=True)
    # 8 identical sublane copies keep the out-block tiling legal; wrapper reads sublane 0.
    sum_ref[...] = jnp.broadcast_to(ps, sum_ref.shape)
    ssq_ref[...] = jnp.broadcast_to(pq, ssq_ref.shape)


# ---------------------------------------------------------------------------
# Kernel 2: lane-dense BN affine + ReLU over the bf16 conv intermediate
# ---------------------------------------------------------------------------
def _bn_relu_kernel(y_ref, scale_ref, shift_ref, o_ref):
    y = y_ref[...].astype(jnp.float32)
    o_ref[...] = jnp.maximum(y * scale_ref[...] + shift_ref[...], 0.0)


# ---------------------------------------------------------------------------
# Wrapper
# ---------------------------------------------------------------------------
def conv_layer_forward(x, params, stride, padding):
    """ConvLayer.forward: relu(bn(conv(x))).  x: (N, C_in, H, W) NCHW float32."""
    weight, _bias, gamma, beta = params   # conv bias cancelled exactly by train-mode BN
    c_out, c_in, kh, kw = weight.shape
    n, _, h, w = x.shape
    s, p = int(stride), int(padding)
    oh = (h + 2 * p - kh) // s + 1
    ow = (w + 2 * p - kw) // s + 1
    wp = w + 2 * p

    _cap, vmem_limit = _vmem_budget()
    blk_budget = vmem_limit // 6          # ~2x in + 2x out + weight + headroom

    # Toeplitz (tap-fused) path for small-channel stride-1 convs.
    use_toeplitz = (s == 1) and (kh * wp * c_in * ow * c_out * 2 <= (4 << 20))
    if use_toeplitz:
        w_bytes = kh * wp * c_in * ow * c_out * 2
        stats_w = ow * c_out
    else:
        w_bytes = kh * kw * c_in * c_out * 2
        stats_w = c_out

    # ---- output-row tile: as large as the per-block VMEM budget allows.
    th = oh
    while th > 1:
        th_in = (th - 1) * s + kh
        need = (2 * th_in * wp * c_in * 2 + 2 * th * ow * c_out * 2
                + 4 * 8 * stats_w * 4 + 2 * w_bytes + th * ow * c_out * 4)
        if need <= blk_budget:
            break
        th = max(1, (th + 1) // 2)
    num_t = -(-oh // th)
    whole_rows = (num_t == 1)
    needs_mask = (oh % th != 0)
    th_in = (th - 1) * s + kh
    rows_in_needed = (num_t * th - 1) * s + kh

    # ---- NCHW -> padded NHWC bf16.  This is the ONLY materialised copy of the input;
    # the kernel reads (possibly overlapping) row windows from it directly.
    x_nhwc = jnp.transpose(x, (0, 2, 3, 1))
    bot_pad = max(0, rows_in_needed - (h + 2 * p))
    x_p = jnp.pad(x_nhwc, ((0, 0), (p, p + bot_pad), (p, p), (0, 0))).astype(jnp.bfloat16)
    hp = h + 2 * p + bot_pad

    if use_toeplitz:
        x_in = x_p.reshape(n, hp, wp * c_in)              # free: collapse minor dims
        # Banded Toeplitz weight: wt[ky, xi*c_in + c, xo*c_out + co] = w[co,c,ky,xi-xo*s].
        w_k = jnp.transpose(weight, (2, 3, 1, 0))          # (KH, KW, C_in, C_out)
        xi = jnp.arange(wp)[:, None]
        xo = jnp.arange(ow)[None, :]
        kx = xi - xo * s
        valid = (kx >= 0) & (kx < kw)
        wt = jnp.where(valid[None, :, :, None, None],
                       w_k[:, jnp.clip(kx, 0, kw - 1)], 0.0)   # (KH, WP, OW, C_in, C_out)
        w_in = jnp.transpose(wt, (0, 1, 3, 2, 4)) \
                  .reshape(kh, wp * c_in, ow * c_out).astype(jnp.bfloat16)
        y_rows, y_cols = th, ow * c_out
        in_block_full = (None, hp, wp * c_in)
        xbuf_shape = (th_in, wp * c_in)
        w_block = (kh, wp * c_in, ow * c_out)
    else:
        x_in = x_p
        w_in = jnp.transpose(weight, (2, 3, 1, 0)) \
                  .reshape(kh * kw, c_in, c_out).astype(jnp.bfloat16)
        y_rows, y_cols = th * ow, c_out
        in_block_full = (None, hp, wp, c_in)
        xbuf_shape = (th_in, wp, c_in)
        w_block = (kh * kw, c_in, c_out)

    if whole_rows:
        if len(in_block_full) == 3:
            x_spec = pl.BlockSpec(in_block_full, lambda b, t: (b, 0, 0))
        else:
            x_spec = pl.BlockSpec(in_block_full, lambda b, t: (b, 0, 0, 0))
        scratch = []
    else:
        x_spec = pl.BlockSpec(memory_space=pl.ANY)          # manual row-window DMA
        scratch = [pltpu.VMEM(xbuf_shape, jnp.bfloat16)]

    # TODO(synk): single-buffer this constant weight block (pipeline_mode=pl.Buffered(1))
    # once buffer_count=1 support is confirmed; saves VMEM headroom for large weights.
    w_spec = pl.BlockSpec(w_block, lambda b, t: (0, 0, 0))

    kernel1 = functools.partial(
        _conv_stats_kernel, toeplitz=use_toeplitz, manual_dma=not whole_rows,
        kh=kh, kw=kw, stride=s, th=th, ow=ow, oh=oh, c_in=c_in, c_out=c_out,
        needs_mask=needs_mask)

    y, sums, ssqs = pl.pallas_call(
        kernel1,
        out_shape=(
            jax.ShapeDtypeStruct((n, num_t, y_rows, y_cols), jnp.bfloat16),
            jax.ShapeDtypeStruct((n, num_t, 8, stats_w), jnp.float32),
            jax.ShapeDtypeStruct((n, num_t, 8, stats_w), jnp.float32),
        ),
        grid_spec=pltpu.PrefetchScalarGridSpec(
            num_scalar_prefetch=0,
            grid=(n, num_t),
            in_specs=[x_spec, w_spec],
            out_specs=(
                pl.BlockSpec((None, None, y_rows, y_cols), lambda b, t: (b, t, 0, 0)),
                pl.BlockSpec((None, None, 8, stats_w), lambda b, t: (b, t, 0, 0)),
                pl.BlockSpec((None, None, 8, stats_w), lambda b, t: (b, t, 0, 0)),
            ),
            scratch_shapes=scratch),
        compiler_params=pltpu.CompilerParams(
            dimension_semantics=("parallel", "parallel"),
            vmem_limit_bytes=vmem_limit),
    )(x_in, w_in)

    # ---- BatchNorm2d training-mode statistics (biased), reduced from partials in JAX.
    # TODO(synk): single-pass E[x^2]-E[x]^2 in f32; switch to a shifted/two-pass scheme if
    # activation magnitudes become large enough for cancellation to matter.
    m_valid = n * oh * ow
    if use_toeplitz:
        ch_sum = jnp.sum(sums[:, :, 0, :].reshape(n, num_t, ow, c_out), axis=(0, 1, 2))
        ch_ssq = jnp.sum(ssqs[:, :, 0, :].reshape(n, num_t, ow, c_out), axis=(0, 1, 2))
    else:
        ch_sum = jnp.sum(sums[:, :, 0, :], axis=(0, 1))
        ch_ssq = jnp.sum(ssqs[:, :, 0, :], axis=(0, 1))
    mean = ch_sum / m_valid
    var = jnp.maximum(ch_ssq / m_valid - mean * mean, 0.0)
    eps = 1e-5
    scale = gamma * jax.lax.rsqrt(var + eps)
    shift = beta - mean * scale

    # ---- kernel 2: lane-dense BN affine + ReLU (cdiv grid, ragged last block allowed).
    total = n * num_t * y_rows * y_cols
    if use_toeplitz:
        cw, reps = y_cols, ow                       # (R, OW*C_out) slab, already lane-dense
    elif c_out % 128 == 0:
        cw, reps = c_out, 1
    elif (128 % c_out == 0) and (total % 128 == 0):
        cw, reps = 128, 128 // c_out
    else:
        cw, reps = c_out, 1
    r = total // cw
    y2 = y.reshape(r, cw)
    scale_row = jnp.tile(scale, reps).reshape(1, cw).astype(jnp.float32)
    shift_row = jnp.tile(shift, reps).reshape(1, cw).astype(jnp.float32)

    row_bytes = cw * (2 + 4) * 2                    # bf16 in + f32 out, double-buffered
    if r <= 8:
        tr = r
    else:
        tr = min(r, max(8, (blk_budget // row_bytes) // 8 * 8))
        if tr >= r:
            # split into >=2 blocks so both v7x TensorCores get work
            tr = min(tr, max(8, ((-(-r // 2)) + 7) // 8 * 8))
    grid2 = -(-r // tr)

    out2 = pl.pallas_call(
        _bn_relu_kernel,
        out_shape=jax.ShapeDtypeStruct((r, cw), jnp.float32),
        grid_spec=pltpu.PrefetchScalarGridSpec(
            num_scalar_prefetch=0,
            grid=(grid2,),
            in_specs=[
                pl.BlockSpec((tr, cw), lambda i: (i, 0)),
                pl.BlockSpec((1, cw), lambda i: (0, 0)),
                pl.BlockSpec((1, cw), lambda i: (0, 0)),
            ],
            out_specs=pl.BlockSpec((tr, cw), lambda i: (i, 0))),
        compiler_params=pltpu.CompilerParams(
            dimension_semantics=("parallel",),
            vmem_limit_bytes=vmem_limit),
    )(y2, scale_row, shift_row)

    out = out2.reshape(n, num_t * th, ow, c_out)[:, :oh]
    # TODO(synk): the final NHWC->NCHW transpose (extra HBM pass) is left to XLA; fusing it
    # into kernel 2 needs an in-kernel transpose to a (c_out, oh*ow) lane-dense block and is
    # only worthwhile when oh*ow % 128 == 0.
    return jnp.transpose(out, (0, 3, 1, 2))


if __name__ == "__main__":
    key = jax.random.PRNGKey(0)
    n, c_in, h, w = 2, 4, 16, 16
    c_out, ksize, stride, padding = 8, 3, 1, 1

    k_x, k_w, k_b = jax.random.split(key, 3)
    x = jax.random.normal(k_x, (n, c_in, h, w), dtype=jnp.float32)

    # Deterministic parameter init (shapes from nn.Conv2d / nn.BatchNorm2d __init__).
    fan_in = c_in * ksize * ksize
    bound = 1.0 / (fan_in ** 0.5)
    weight = jax.random.uniform(k_w, (c_out, c_in, ksize, ksize),
                                minval=-bound, maxval=bound, dtype=jnp.float32)
    bias = jax.random.uniform(k_b, (c_out,), minval=-bound, maxval=bound,
                              dtype=jnp.float32)
    gamma = jnp.ones((c_out,), jnp.float32)    # BatchNorm2d default weight
    beta = jnp.zeros((c_out,), jnp.float32)    # BatchNorm2d default bias

    out = conv_layer_forward(x, (weight, bias, gamma, beta), stride, padding)
    out = jax.block_until_ready(out)
    assert out.shape == (n, c_out, h, w), out.shape

    # Pure-JAX f32 reference (conv -> training-mode BN -> relu).
    ref_conv = jax.lax.conv_general_dilated(
        x, weight, window_strides=(stride, stride),
        padding=[(padding, padding), (padding, padding)],
        dimension_numbers=("NCHW", "OIHW", "NCHW")) + bias.reshape(1, c_out, 1, 1)
    rm = ref_conv.mean(axis=(0, 2, 3), keepdims=True)
    rv = ref_conv.var(axis=(0, 2, 3), keepdims=True)
    ref = jnp.maximum(
        (ref_conv - rm) * gamma.reshape(1, c_out, 1, 1) / jnp.sqrt(rv + 1e-5)
        + beta.reshape(1, c_out, 1, 1), 0.0)

    # bf16 operands / bf16 intermediate -> relaxed tolerance vs the f32 reference.
    err = float(jnp.max(jnp.abs(out - ref)))
    assert jnp.allclose(out, ref, rtol=5e-2, atol=5e-2), err

    print("KERNEL_OK")
</pallas_src>

<mosaic_0001>
module attributes {stable_mosaic.version = 11 : i64} {
  func.func @_conv_stats_kernel(%arg0: i32, %arg1: i32, %arg2: memref<1x18x72xbf16, #tpu.memory_space<vmem>>, %arg3: memref<3x72x128xbf16, #tpu.memory_space<vmem>>, %arg4: memref<1x1x16x128xbf16, #tpu.memory_space<vmem>>, %arg5: memref<1x1x8x128xf32, #tpu.memory_space<vmem>>, %arg6: memref<1x1x8x128xf32, #tpu.memory_space<vmem>>) attributes {dimension_semantics = [#tpu.dimension_semantics<parallel>, #tpu.dimension_semantics<parallel>], iteration_bounds = array<i64: 2, 1>, scalar_prefetch = 0 : i64, scratch_operands = 0 : i64, tpu.core_type = #tpu.core_type<tc>, window_params = [{transform_indices = @transform_0, window_bounds = array<i64: 1, 18, 72>}, {pipeline_mode = #tpu.pipeline_mode<synchronous>, transform_indices = @transform_1, window_bounds = array<i64: 3, 72, 128>}, {transform_indices = @transform_2, window_bounds = array<i64: 1, 1, 16, 128>}, {transform_indices = @transform_3, window_bounds = array<i64: 1, 1, 8, 128>}, {transform_indices = @transform_4, window_bounds = array<i64: 1, 1, 8, 128>}]} {
    %cst = arith.constant 0.000000e+00 : f32
    %0 = vector.broadcast %cst : f32 to vector<16x128xf32>
    %c0 = arith.constant 0 : index
    %c0_0 = arith.constant 0 : index
    %c0_1 = arith.constant 0 : index
    %1 = vector.load %arg2[%c0, %c0_0, %c0_1] : memref<1x18x72xbf16, #tpu.memory_space<vmem>>, vector<1x16x72xbf16>
    %2 = vector.shape_cast %1 : vector<1x16x72xbf16> to vector<16x72xbf16>
    %c0_2 = arith.constant 0 : index
    %c0_3 = arith.constant 0 : index
    %c0_4 = arith.constant 0 : index
    %3 = vector.load %arg3[%c0_2, %c0_3, %c0_4] : memref<3x72x128xbf16, #tpu.memory_space<vmem>>, vector<1x72x128xbf16>
    %4 = vector.shape_cast %3 : vector<1x72x128xbf16> to vector<72x128xbf16>
    %cst_5 = arith.constant dense<0.000000e+00> : vector<16x128xf32>
    %5 = tpu.matmul %2, %4, %cst_5 {dimension_numbers = #tpu.dot_dimension_numbers<[1], [0], [0], [1], [0, 0, 1, 1], [], []>} : vector<16x72xbf16>, vector<72x128xbf16>, vector<16x128xf32> -> vector<16x128xf32>
    %6 = arith.addf %0, %5 : vector<16x128xf32>
    %c0_6 = arith.constant 0 : index
    %c1 = arith.constant 1 : index
    %c0_7 = arith.constant 0 : index
    %7 = vector.load %arg2[%c0_6, %c1, %c0_7] : memref<1x18x72xbf16, #tpu.memory_space<vmem>>, vector<1x16x72xbf16>
    %8 = vector.shape_cast %7 : vector<1x16x72xbf16> to vector<16x72xbf16>
    %c1_8 = arith.constant 1 : index
    %c0_9 = arith.constant 0 : index
    %c0_10 = arith.constant 0 : index
    %9 = vector.load %arg3[%c1_8, %c0_9, %c0_10] : memref<3x72x128xbf16, #tpu.memory_space<vmem>>, vector<1x72x128xbf16>
    %10 = vector.shape_cast %9 : vector<1x72x128xbf16> to vector<72x128xbf16>
    %cst_11 = arith.constant dense<0.000000e+00> : vector<16x128xf32>
    %11 = tpu.matmul %8, %10, %cst_11 {dimension_numbers = #tpu.dot_dimension_numbers<[1], [0], [0], [1], [0, 0, 1, 1], [], []>} : vector<16x72xbf16>, vector<72x128xbf16>, vector<16x128xf32> -> vector<16x128xf32>
    %12 = arith.addf %6, %11 : vector<16x128xf32>
    %c0_12 = arith.constant 0 : index
    %c2 = arith.constant 2 : index
    %c0_13 = arith.constant 0 : index
    %13 = vector.load %arg2[%c0_12, %c2, %c0_13] : memref<1x18x72xbf16, #tpu.memory_space<vmem>>, vector<1x16x72xbf16>
    %14 = vector.shape_cast %13 : vector<1x16x72xbf16> to vector<16x72xbf16>
    %c2_14 = arith.constant 2 : index
    %c0_15 = arith.constant 0 : index
    %c0_16 = arith.constant 0 : index
    %15 = vector.load %arg3[%c2_14, %c0_15, %c0_16] : memref<3x72x128xbf16, #tpu.memory_space<vmem>>, vector<1x72x128xbf16>
    %16 = vector.shape_cast %15 : vector<1x72x128xbf16> to vector<72x128xbf16>
    %cst_17 = arith.constant dense<0.000000e+00> : vector<16x128xf32>
    %17 = tpu.matmul %14, %16, %cst_17 {dimension_numbers = #tpu.dot_dimension_numbers<[1], [0], [0], [1], [0, 0, 1, 1], [], []>} : vector<16x72xbf16>, vector<72x128xbf16>, vector<16x128xf32> -> vector<16x128xf32>
    %18 = arith.addf %12, %17 : vector<16x128xf32>
    %19 = arith.truncf %18 : vector<16x128xf32> to vector<16x128xbf16>
    %c0_18 = arith.constant 0 : index
    %c0_19 = arith.constant 0 : index
    %c0_20 = arith.constant 0 : index
    %c0_21 = arith.constant 0 : index
    %20 = vector.load %arg4[%c0_18, %c0_19, %c0_20, %c0_21] : memref<1x1x16x128xbf16, #tpu.memory_space<vmem>>, vector<1x1x16x128xbf16>
    %21 = vector.shape_cast %20 : vector<1x1x16x128xbf16> to vector<16x128xbf16>
    %22 = vector.shape_cast %19 : vector<16x128xbf16> to vector<1x1x16x128xbf16>
    tpu.vector_store %arg4[%c0_18, %c0_19, %c0_20, %c0_21], %22 {strides = array<i32>} : memref<1x1x16x128xbf16, #tpu.memory_space<vmem>>, vector<1x1x16x128xbf16>,
    %cst_22 = arith.constant dense<0.000000e+00> : vector<128xf32>
    %23 = vector.multi_reduction <add>, %18, %cst_22 [0] : vector<16x128xf32> to vector<128xf32>
    %24 = vector.shape_cast %23 : vector<128xf32> to vector<1x128xf32>
    %25 = arith.mulf %18, %18 : vector<16x128xf32>
    %cst_23 = arith.constant dense<0.000000e+00> : vector<128xf32>
    %26 = vector.multi_reduction <add>, %25, %cst_23 [0] : vector<16x128xf32> to vector<128xf32>
    %27 = vector.shape_cast %26 : vector<128xf32> to vector<1x128xf32>
    %28 = vector.shape_cast %24 : vector<1x128xf32> to vector<1x128xf32>
    %29 = vector.broadcast %28 : vector<1x128xf32> to vector<8x128xf32>
    %c0_24 = arith.constant 0 : index
    %c0_25 = arith.constant 0 : index
    %c0_26 = arith.constant 0 : index
    %c0_27 = arith.constant 0 : index
    %30 = vector.load %arg5[%c0_24, %c0_25, %c0_26, %c0_27] : memref<1x1x8x128xf32, #tpu.memory_space<vmem>>, vector<1x1x8x128xf32>
    %31 = vector.shape_cast %30 : vector<1x1x8x128xf32> to vector<8x128xf32>
    %32 = vector.shape_cast %29 : vector<8x128xf32> to vector<1x1x8x128xf32>
    tpu.vector_store %arg5[%c0_24, %c0_25, %c0_26, %c0_27], %32 {strides = array<i32>} : memref<1x1x8x128xf32, #tpu.memory_space<vmem>>, vector<1x1x8x128xf32>,
    %33 = vector.shape_cast %27 : vector<1x128xf32> to vector<1x128xf32>
    %34 = vector.broadcast %33 : vector<1x128xf32> to vector<8x128xf32>
    %c0_28 = arith.constant 0 : index
    %c0_29 = arith.constant 0 : index
    %c0_30 = arith.constant 0 : index
    %c0_31 = arith.constant 0 : index
    %35 = vector.load %arg6[%c0_28, %c0_29, %c0_30, %c0_31] : memref<1x1x8x128xf32, #tpu.memory_space<vmem>>, vector<1x1x8x128xf32>
    %36 = vector.shape_cast %35 : vector<1x1x8x128xf32> to vector<8x128xf32>
    %37 = vector.shape_cast %34 : vector<8x128xf32> to vector<1x1x8x128xf32>
    tpu.vector_store %arg6[%c0_28, %c0_29, %c0_30, %c0_31], %37 {strides = array<i32>} : memref<1x1x8x128xf32, #tpu.memory_space<vmem>>, vector<1x1x8x128xf32>,
    return
  }
  func.func @transform_0(%arg0: i32, %arg1: i32) -> (i32, i32, i32) {
    %c0_i32 = arith.constant 0 : i32
    %c0_i32_0 = arith.constant 0 : i32
    %c0_i32_1 = arith.constant 0 : i32
    return %arg0, %c0_i32, %c0_i32_0 : i32, i32, i32
  }
  func.func @transform_1(%arg0: i32, %arg1: i32) -> (i32, i32, i32) {
    %c0_i32 = arith.constant 0 : i32
    %c0_i32_0 = arith.constant 0 : i32
    %c0_i32_1 = arith.constant 0 : i32
    %c0_i32_2 = arith.constant 0 : i32
    return %c0_i32, %c0_i32_0, %c0_i32_1 : i32, i32, i32
  }
  func.func @transform_2(%arg0: i32, %arg1: i32) -> (i32, i32, i32, i32) {
    %c0_i32 = arith.constant 0 : i32
    %c0_i32_0 = arith.constant 0 : i32
    %c0_i32_1 = arith.constant 0 : i32
    return %arg0, %arg1, %c0_i32, %c0_i32_0 : i32, i32, i32, i32
  }
  func.func @transform_3(%arg0: i32, %arg1: i32) -> (i32, i32, i32, i32) {
    %c0_i32 = arith.constant 0 : i32
    %c0_i32_0 = arith.constant 0 : i32
    %c0_i32_1 = arith.constant 0 : i32
    return %arg0, %arg1, %c0_i32, %c0_i32_0 : i32, i32, i32, i32
  }
  func.func @transform_4(%arg0: i32, %arg1: i32) -> (i32, i32, i32, i32) {
    %c0_i32 = arith.constant 0 : i32
    %c0_i32_0 = arith.constant 0 : i32
    %c0_i32_1 = arith.constant 0 : i32
    return %arg0, %arg1, %c0_i32, %c0_i32_0 : i32, i32, i32, i32
  }
}

</mosaic_0001>

<llo_original>
// kernel: tpu_custom_call.1
$region0: #{tpu_custom_call.1}
  #allocation0 [shape = 'u32[]', space=smem, size = 0x4, offset = 0x4, fixed_abs, tag = 'smem constant byte address 0x4 - core index']
  #allocation1 [shape = 'u32[144,128]{1,0:T(1,128)}', space=vmem, size = 0x12000, scoped, tag = 'internal scratch']
  %s0 = inlined_call_operand.vmem [shape: bf16[2,18,72], index: 0, kind: input, shape index: {}]
  %s1 = inlined_call_operand.hbm [shape: bf16[3,72,128], index: 1, kind: input, shape index: {}]
  %s2 = inlined_call_operand.hbm [shape: bf16[2,1,16,128], index: 2, kind: output, shape index: {0}]
  %s3 = inlined_call_operand.hbm [shape: f32[2,1,8,128], index: 3, kind: output, shape index: {1}]
  %s4 = inlined_call_operand.hbm [shape: f32[2,1,8,128], index: 4, kind: output, shape index: {2}]
  %5 = xla_tuple %s2, %s3, %s4
  %s6 = sld [smem:[#allocation0]]
  $region61: #{tpu_custom_call.1} parent=0
    _
  %s8 = ssub.s32 1, %s6
  %s9 = scalar_select 0, %s8, %s6
  $region1: #{tpu_custom_call.1} parent=0
    #allocation2 [shape = 'u8[55296]{0}', space=vmem, size = 0xd800, scoped, tag = 'input window, operand 1, single buffered']
    #allocation3 [shape = 's32[2]{0}', space=sflag, size = 0x8, scoped, tag = 'scoped memory for tpu_custom_call.1']
    #allocation4 [shape = 's32[2]{0}', space=sflag, size = 0x8, scoped, tag = 'scoped memory for tpu_custom_call.1']
    #allocation5 [shape = 'u8[8192]{0}', space=vmem, size = 0x2000, scoped, tag = 'output window, operand 0']
    #allocation6 [shape = 'u8[8192]{0}', space=vmem, size = 0x2000, scoped, tag = 'output window, operand 1']
    #allocation7 [shape = 's32[2]{0}', space=sflag, size = 0x8, scoped, tag = 'scoped memory for tpu_custom_call.1']
    #allocation8 [shape = 'u8[8192]{0}', space=vmem, size = 0x2000, scoped, tag = 'output window, operand 2']
    %10 = vsyncpa [#allocation3], 0
    %11 = vsyncpa [#allocation4], 0
    %s12 = scalar_lea.sflag [#allocation4], 1
    %13 = vsyncpa %s12, 0
    %14 = vsyncpa [#allocation7], 0
    %s15 = scalar_lea.sflag [#allocation7], 1
    %16 = vsyncpa %s15, 0
    loop: start=0, step=1, limit=4
    $region2: #{tpu_custom_call.1} parent=1 // loop_pre_header
      _
    $region3: #{tpu_custom_call.1} parent=1 // loop_header
      %s18 = sphi 0, %s22
      %p19 = scmp.ge.s32.totalorder %s18, 4
      %s25 = sphi 0, %s37
      %s26 = sphi 0, %s33
      %s27 = sphi 0, %s25
      %s28 = sphi 0, %s26
      %s29 = sphi 0, %s27
      %s30 = sphi 0, %s28
      %s40 = sphi 0, %s42
      %s43 = sphi 0, %s40
      %s44 = sphi 0, %s43
      %s60 = sphi 0, %s44
      %s64 = sphi 0, %s64
      %s66 = sphi 0, %s64
      %s67 = sphi 0, %s66
      %s81 = sphi 0, %s67
      %s89 = sphi 0, %s91
      %s92 = sphi 0, %s89
      %s93 = sphi 0, %s92
      %s109 = sphi 0, %s93
      %s117 = sphi 0, %s119
      %s120 = sphi 0, %s117
      %s121 = sphi 0, %s120
      %s137 = sphi 0, %s121
      %s145 = sphi 0, %s147
      %s148 = sphi 0, %s145
      %s149 = sphi 0, %s148
      %s165 = sphi 0, %s149
    $region4: #{tpu_custom_call.1} parent=1 // loop_header_branch
      %21 = sbr.rel (%p19) target = $region8
    $region5: #{tpu_custom_call.1} parent=1 // loop_body
      %s23 = ssub.s32 %s18, 1
      %s24 = ssub.s32 %s18, 2
      %s31 = sadd.s32 1, %s26
      %p32 = scmp.ge.s32.totalorder %s31, 1
      %s33 = scalar_select %p32, 0, %s31
      %s34 = sadd.s32 1, %s25
      %s35 = scalar_select %p32, %s34, %s25
      %p36 = scmp.ge.s32.totalorder %s35, 2
      %s37 = scalar_select %p36, 0, %s35
      %s38 = ssub.s32 %s25, %s37
      %p39 = scmp.eq.s32.totalorder %s38, 0
      %s41 = sadd.s32 %s40, 1
      %s42 = scalar_select %p39, %s40, %s41
      %p45 = pneg %p39
      %p46 = scmp.eq.s32.totalorder %s18, 1
      %p47 = por %p45, %p46
      %p48 = scmp.ne.s32.totalorder %s40, %s43
      %p49 = scmp.eq.s32.totalorder %s18, 0
      %p50 = por %p48, %p49
      %p51 = scmp.ne.s32.totalorder %s40, %s43
      %p52 = scmp.eq.s32.totalorder %s23, 1
      %p53 = por %p51, %p52
      %p54 = scmp.ne.s32.totalorder %s43, %s44
      %p55 = scmp.eq.s32.totalorder %s23, 0
      %p56 = por %p54, %p55
      %p57 = scmp.ne.s32.totalorder %s43, %s44
      %p58 = scmp.eq.s32.totalorder %s24, 1
      %p59 = por %p57, %p58
      %p61 = scmp.ne.s32.totalorder %s44, %s60
      %p62 = scmp.eq.s32.totalorder %s24, 0
      %p63 = por %p61, %p62
      %s65 = sadd.s32 %s64, 1
      %p68 = scmp.eq.s32.totalorder %s18, 1
      %p69 = scmp.ne.s32.totalorder %s64, %s66
      %p70 = scmp.eq.s32.totalorder %s18, 0
      %p71 = por %p69, %p70
      %p72 = scmp.ne.s32.totalorder %s64, %s66
      %p73 = scmp.eq.s32.totalorder %s23, 1
      %p74 = por %p72, %p73
      %p75 = scmp.ne.s32.totalorder %s66, %s67
      %p76 = scmp.eq.s32.totalorder %s23, 0
      %p77 = por %p75, %p76
      %p78 = scmp.ne.s32.totalorder %s66, %s67
      %p79 = scmp.eq.s32.totalorder %s24, 1
      %p80 = por %p78, %p79
      %p82 = scmp.ne.s32.totalorder %s67, %s81
      %p83 = scmp.eq.s32.totalorder %s24, 0
      %p84 = por %p82, %p83
      %s85 = ssub.s32 %s25, %s37
      %s86 = ssub.s32 %s26, %s33
      %s87 = sor.u32 %s85, %s86
      %p88 = scmp.eq.s32.totalorder %s87, 0
      %s90 = sadd.s32 %s89, 1
      %s91 = scalar_select %p88, %s89, %s90
      %p94 = pneg %p88
      %p95 = scmp.eq.s32.totalorder %s18, 1
      %p96 = por %p94, %p95
      %p97 = scmp.ne.s32.totalorder %s89, %s92
      %p98 = scmp.eq.s32.totalorder %s18, 0
      %p99 = por %p97, %p98
      %p100 = scmp.ne.s32.totalorder %s89, %s92
      %p101 = scmp.eq.s32.totalorder %s23, 1
      %p102 = por %p100, %p101
      %p103 = scmp.ne.s32.totalorder %s92, %s93
      %p104 = scmp.eq.s32.totalorder %s23, 0
      %p105 = por %p103, %p104
      %p106 = scmp.ne.s32.totalorder %s92, %s93
      %p107 = scmp.eq.s32.totalorder %s24, 1
      %p108 = por %p106, %p107
      %p110 = scmp.ne.s32.totalorder %s93, %s109
      %p111 = scmp.eq.s32.totalorder %s24, 0
      %p112 = por %p110, %p111
      %s113 = ssub.s32 %s25, %s37
      %s114 = ssub.s32 %s26, %s33
      %s115 = sor.u32 %s113, %s114
      %p116 = scmp.eq.s32.totalorder %s115, 0
      %s118 = sadd.s32 %s117, 1
      %s119 = scalar_select %p116, %s117, %s118
      %p122 = pneg %p116
      %p123 = scmp.eq.s32.totalorder %s18, 1
      %p124 = por %p122, %p123
      %p125 = scmp.ne.s32.totalorder %s117, %s120
      %p126 = scmp.eq.s32.totalorder %s18, 0
      %p127 = por %p125, %p126
      %p128 = scmp.ne.s32.totalorder %s117, %s120
      %p129 = scmp.eq.s32.totalorder %s23, 1
      %p130 = por %p128, %p129
      %p131 = scmp.ne.s32.totalorder %s120, %s121
      %p132 = scmp.eq.s32.totalorder %s23, 0
      %p133 = por %p131, %p132
      %p134 = scmp.ne.s32.totalorder %s120, %s121
      %p135 = scmp.eq.s32.totalorder %s24, 1
      %p136 = por %p134, %p135
      %p138 = scmp.ne.s32.totalorder %s121, %s137
      %p139 = scmp.eq.s32.totalorder %s24, 0
      %p140 = por %p138, %p139
      %s141 = ssub.s32 %s25, %s37
      %s142 = ssub.s32 %s26, %s33
      %s143 = sor.u32 %s141, %s142
      %p144 = scmp.eq.s32.totalorder %s143, 0
      %s146 = sadd.s32 %s145, 1
      %s147 = scalar_select %p144, %s145, %s146
      %p150 = pneg %p144
      %p151 = scmp.eq.s32.totalorder %s18, 1
      %p152 = por %p150, %p151
      %p153 = scmp.ne.s32.totalorder %s145, %s148
      %p154 = scmp.eq.s32.totalorder %s18, 0
      %p155 = por %p153, %p154
      %p156 = scmp.ne.s32.totalorder %s145, %s148
      %p157 = scmp.eq.s32.totalorder %s23, 1
      %p158 = por %p156, %p157
      %p159 = scmp.ne.s32.totalorder %s148, %s149
      %p160 = scmp.eq.s32.totalorder %s23, 0
      %p161 = por %p159, %p160
      %p162 = scmp.ne.s32.totalorder %s148, %s149
      %p163 = scmp.eq.s32.totalorder %s24, 1
      %p164 = por %p162, %p163
      %p166 = scmp.ne.s32.totalorder %s149, %s165
      %p167 = scmp.eq.s32.totalorder %s24, 0
      %p168 = por %p166, %p167
      %p169 = scmp.le.s32.totalorder 1, %s18
      %p170 = scmp.lt.s32.totalorder %s18, 3
      %p171 = pnand %p169, %p170
      %p172 = pneg %p171
      // Predicated region
      $region9: #{tpu_custom_call.1} parent=5 // pred_check
        _
      $region10: #{tpu_custom_call.1} parent=5 // pred_check_branch
        %174 = sbr.rel (%p171) target = $region12
      $region11: #{tpu_custom_call.1} parent=5 // pred_region
        %s175 = ssub.s32 %s18, 1
        // Predicated region
        $region13: #{tpu_custom_call.1} parent=11 // pred_check
          %p176 = pneg %p77
        $region14: #{tpu_custom_call.1} parent=11 // pred_check_branch
          %178 = sbr.rel (%p176) target = $region16
        $region15: #{tpu_custom_call.1} parent=11 // pred_region
          %s180 = ssub.s32 1728, 1728
          %181 = vsyncadd [#allocation3], %s180
          %s182 = sshll.u32 [#allocation2], 4
          %s183 = int_to_ptr.vmem [resolvable:$true] %s182
          %188 = dma.hbm_to_vmem [thread:$0]  %s1, 1728, %s183, [#allocation3], 64, 64, 4
        $region16: #{tpu_custom_call.1} parent=11 // pred_fallthru
          _
      $region12: #{tpu_custom_call.1} parent=5 // pred_fallthru
        _
      %p189 = scmp.lt.s32.totalorder %s18, 2
      // Predicated region
      $region17: #{tpu_custom_call.1} parent=5 // pred_check
        %p190 = pneg %p189
      $region18: #{tpu_custom_call.1} parent=5 // pred_check_branch
        %192 = sbr.rel (%p190) target = $region20
      $region19: #{tpu_custom_call.1} parent=5 // pred_region
        // Predicated region
        $region21: #{tpu_custom_call.1} parent=19 // pred_check
          %p193 = pneg %p50
        $region22: #{tpu_custom_call.1} parent=19 // pred_check_branch
          %195 = sbr.rel (%p193) target = $region24
        $region23: #{tpu_custom_call.1} parent=19 // pred_region
          %p196 = scmp.lt.s32.totalorder %s25, 1
          %s197 = scalar_select %p196, %s25, 1
          %s198 = smul.addr %s197, 3
          %s199 = smul.addr %s198, 4
          %s200 = scalar_lea.vmem %s0, %s199
        $region24: #{tpu_custom_call.1} parent=19 // pred_fallthru
          _
      $region20: #{tpu_custom_call.1} parent=5 // pred_fallthru
        _
      %p201 = scmp.le.s32.totalorder 1, %s18
      %p202 = scmp.lt.s32.totalorder %s18, 3
      %p203 = pnand %p201, %p202
      %p204 = pneg %p203
      // Predicated region
      $region25: #{tpu_custom_call.1} parent=5 // pred_check
        _
      $region26: #{tpu_custom_call.1} parent=5 // pred_check_branch
        %206 = sbr.rel (%p203) target = $region28
      $region27: #{tpu_custom_call.1} parent=5 // pred_region
        %s207 = ssub.s32 %s18, 1
        // Predicated region
        $region29: #{tpu_custom_call.1} parent=27 // pred_check
          %p208 = pneg %p77
        $region30: #{tpu_custom_call.1} parent=27 // pred_check_branch
          %210 = sbr.rel (%p208) target = $region32
        $region31: #{tpu_custom_call.1} parent=27 // pred_region
          %211 = dma.done [#allocation3], 1728
        $region32: #{tpu_custom_call.1} parent=27 // pred_fallthru
          _
        %p212 = scmp.lt.s32.totalorder %s27, 1
        %s213 = scalar_select %p212, %s27, 1
        %s214 = smul.addr %s213, 3
        %s215 = smul.addr %s214, 4
        %s216 = scalar_lea.vmem %s0, %s215
        %p217 = pneg %p56
        %p218 = pneg %p53
        %p219 = pneg %p77
        %p220 = pneg %p74
        %p221 = pneg %p105
        %p222 = pneg %p102
        %s223 = sand.u32 %s92, 1
        %s224 = scalar_lea.sflag [#allocation4], %s223
        %s225 = sand.u32 %s92, 1
        %s226 = smul.addr %s225, 8
        %s227 = scalar_lea.vmem [#allocation5], %s226
        %p228 = pneg %p133
        %p229 = pneg %p130
        %s230 = sand.u32 %s23, 1
        %s231 = scalar_lea.sflag [#allocation7], %s230
        %s232 = sand.u32 %s120, 1
        %s233 = smul.addr %s232, 8
        %s234 = scalar_lea.vmem [#allocation6], %s233
        %p235 = pneg %p161
        %p236 = pneg %p158
        %s237 = sand.u32 %s23, 1
        %s238 = scalar_lea.sflag [#allocation7], %s237
        %s239 = sand.u32 %s148, 1
        %s240 = smul.addr %s239, 8
        %s241 = scalar_lea.vmem [#allocation8], %s240
        %p242 = scmp.lt.s32.totalorder %s27, 1
        %s243 = scalar_select %p242, %s27, 1
        %s244 = smul.addr %s243, 3
        %s245 = smul.addr %s244, 4
        %s246 = scalar_lea.vmem %s0, %s245
        %v248 = vld [vmem:[%s246] sm:$0xf]
        %v249 = vld [vmem:[%s246 + $0x4] sm:$0xf]
        %v250 = vld [vmem:[#allocation2] sm:$0xf]
        %v251 = vld [vmem:[#allocation2 + $0x4] sm:$0xf]
        %v252 = vld [vmem:[#allocation2 + $0x8] sm:$0xf]
        %v253 = vld [vmem:[#allocation2 + $0xc] sm:$0xf]
        %v254 = vld [vmem:[#allocation2 + $0x10] sm:$0xf]
        %v255 = vld [vmem:[#allocation2 + $0x14] sm:$0xf]
        %v256 = vld [vmem:[#allocation2 + $0x18] sm:$0xf]
        %v257 = vld [vmem:[#allocation2 + $0x1c] sm:$0xf]
        %v258 = vld [vmem:[#allocation2 + $0x20] sm:$0xf]
        %v259 = vld [vmem:[%s246 + $0x8] sm:$0x1]
        %s260 = scalar_lea.vmem [#allocation2], 36
        %v261 = vld [vmem:[%s260] sm:$0xf]
        %v262 = vld [vmem:[%s260 + $0x4] sm:$0xf]
        %v263 = vld [vmem:[%s260 + $0x8] sm:$0xf]
        %v264 = vld [vmem:[%s260 + $0xc] sm:$0xf]
        %v265 = vld [vmem:[%s260 + $0x10] sm:$0xf]
        %v266 = vld [vmem:[%s260 + $0x14] sm:$0xf]
        %v267 = vld [vmem:[%s260 + $0x18] sm:$0xf]
        %v268 = vld [vmem:[%s260 + $0x1c] sm:$0xf]
        %v269 = vld [vmem:[%s260 + $0x20] sm:$0xf]
        %v273 = vunpack.c.l.b16 %v248
        %v274 = vunpack.c.l.b16 %v249
        %v275 = vunpack.c.l.b16 %v259
        %v276 = vpack.c.b16 %v274, %v273
        %v277 = vpack.c.b16 %v275, %v275
        %vm278 = vsmask.f32 7424
        %v280 = vshrl.u32 %v276, 16
        %v282 = vshll.u32 %v276, 16
        %v284 = vrot.slane %v282, 1
        %v285 = vor.u32 %v280, %v284
        %v287 = vshll.u32 %v277, 16
        %v289 = vrot.slane %v287, 1
        %v290 = vsel %vm278, %v285, %v289
        %v300 = vunpack.c.l.b16 %v261
        %v301 = vunpack.c.l.b16 %v262
        %v302 = vunpack.c.l.b16 %v263
        %v303 = vunpack.c.l.b16 %v264
        %v304 = vunpack.c.l.b16 %v265
        %v305 = vunpack.c.l.b16 %v266
        %v306 = vunpack.c.l.b16 %v267
        %v307 = vunpack.c.l.b16 %v268
        %v308 = vunpack.c.l.b16 %v269
        %v309 = vpack.c.b16 %v301, %v300
        %v310 = vpack.c.b16 %v303, %v302
        %v311 = vpack.c.b16 %v305, %v304
        %v312 = vpack.c.b16 %v307, %v306
        %v313 = vpack.c.b16 %v308, %v308
        %vm318 = vcmask 588800
        %v320 = vsel %vm318, %v290, 0
        %vm322 = vcmask 1043456
        %v324 = vsel %vm322, %v313, 0
        %326 = vmatprep.subr.bf16.mxu0 0
        %327 = vmatpush1.bf16.msra.mxu0 %v309
        %328 = vmatprep.subr.bf16.mxu0 0
        %329 = vmatpush1.bf16.msra.mxu0 %v310
        %330 = vmatprep.subr.bf16.mxu0 0
        %331 = vmatpush1.bf16.msra.mxu0 %v311
        %332 = vmatprep.subr.bf16.mxu0 0
        %333 = vmatpush1.bf16.msra.mxu0 %v312
        %334 = vmatprep.subr.bf16.mxu0 0
        %335 = vmatpush1.bf16.msra.mxu0 %v324
        %336 = vmatprep.subr.bf16.mxu0 0
        %337 = vmatpush1.bf16.msra.mxu0 0
        %338 = vmatprep.subr.bf16.mxu0 0
        %339 = vmatpush1.bf16.msra.mxu0 0
        %340 = vmatprep.subr.bf16.mxu0 0
        %341 = vmatpush1.bf16.msra.mxu0 0
        %342 = vmatprep.subr.bf16.mxu0 0
        %343 = vmatpush1.bf16.msra.mxu0 0
        %344 = vmatprep.subr.bf16.mxu0 0
        %345 = vmatpush1.bf16.msra.mxu0 0
        %346 = vmatprep.subr.bf16.mxu0 0
        %347 = vmatpush1.bf16.msra.mxu0 0
        %348 = vmatprep.subr.bf16.mxu0 0
        %349 = vmatpush1.bf16.msra.mxu0 0
        %350 = vmatprep.subr.bf16.mxu0 0
        %351 = vmatpush1.bf16.msra.mxu0 0
        %352 = vmatprep.subr.bf16.mxu0 0
        %353 = vmatpush1.bf16.msra.mxu0 0
        %354 = vmatprep.subr.bf16.mxu0 0
        %355 = vmatpush1.bf16.msra.mxu0 0
        %356 = vmatprep.subr.bf16.mxu0 0
        %357 = vmatpush1.bf16.msra.mxu0 0
        %358 = vmatprep.mubr.bf16.mxu0 0
        %359 = vmatmul.mubr.bf16.gmra.mrb[0].mxu0 %v320
        %v360 = vpop.f32.mrb[0].mxu0
        %v361 = vadd.f32 0.0, %v360
        %v362 = vpop.f32.mrb[0].mxu0
        %v363 = vpop.f32.mrb[0].mxu0
        %v364 = vadd.f32 0.0, %v363
        %v365 = vpop.f32.mrb[0].mxu0
        %366 = vdwg.mxu0
        %v376 = vunpack.c.l.b16 %v250
        %v377 = vunpack.c.l.b16 %v251
        %v378 = vunpack.c.l.b16 %v252
        %v379 = vunpack.c.l.b16 %v253
        %v380 = vunpack.c.l.b16 %v254
        %v381 = vunpack.c.l.b16 %v255
        %v382 = vunpack.c.l.b16 %v256
        %v383 = vunpack.c.l.b16 %v257
        %v384 = vunpack.c.l.b16 %v258
        %v385 = vpack.c.b16 %v377, %v376
        %v386 = vpack.c.b16 %v379, %v378
        %v387 = vpack.c.b16 %v381, %v380
        %v388 = vpack.c.b16 %v383, %v382
        %v389 = vpack.c.b16 %v384, %v384
        %v394 = vsel %vm318, %v276, 0
        %v397 = vsel %vm322, %v389, 0
        %399 = vmatprep.subr.bf16.mxu0 0
        %400 = vmatpush1.bf16.msra.mxu0 %v385
        %401 = vmatprep.subr.bf16.mxu0 0
        %402 = vmatpush1.bf16.msra.mxu0 %v386
        %403 = vmatprep.subr.bf16.mxu0 0
        %404 = vmatpush1.bf16.msra.mxu0 %v387
        %405 = vmatprep.subr.bf16.mxu0 0
        %406 = vmatpush1.bf16.msra.mxu0 %v388
        %407 = vmatprep.subr.bf16.mxu0 0
        %408 = vmatpush1.bf16.msra.mxu0 %v397
        %409 = vmatprep.subr.bf16.mxu0 0
        %410 = vmatpush1.bf16.msra.mxu0 0
        %411 = vmatprep.subr.bf16.mxu0 0
        %412 = vmatpush1.bf16.msra.mxu0 0
        %413 = vmatprep.subr.bf16.mxu0 0
        %414 = vmatpush1.bf16.msra.mxu0 0
        %415 = vmatprep.subr.bf16.mxu0 0
        %416 = vmatpush1.bf16.msra.mxu0 0
        %417 = vmatprep.subr.bf16.mxu0 0
        %418 = vmatpush1.bf16.msra.mxu0 0
        %419 = vmatprep.subr.bf16.mxu0 0
        %420 = vmatpush1.bf16.msra.mxu0 0
        %421 = vmatprep.subr.bf16.mxu0 0
        %422 = vmatpush1.bf16.msra.mxu0 0
        %423 = vmatprep.subr.bf16.mxu0 0
        %424 = vmatpush1.bf16.msra.mxu0 0
        %425 = vmatprep.subr.bf16.mxu0 0
        %426 = vmatpush1.bf16.msra.mxu0 0
        %427 = vmatprep.subr.bf16.mxu0 0
        %428 = vmatpush1.bf16.msra.mxu0 0
        %429 = vmatprep.subr.bf16.mxu0 0
        %430 = vmatpush1.bf16.msra.mxu0 0
        %431 = vmatprep.mubr.bf16.mxu0 0
        %432 = vmatmul.mubr.bf16.gmra.mrb[0].mxu0 %v394
        %v433 = vpop.f32.mrb[0].mxu0
        %v434 = vadd.f32 %v361, %v433
        %v435 = vpop.f32.mrb[0].mxu0
        %v436 = vpop.f32.mrb[0].mxu0
        %v437 = vadd.f32 %v364, %v436
        %v438 = vpop.f32.mrb[0].mxu0
        %439 = vdwg.mxu0
        %v440 = vld [vmem:[%s246] sm:$0xe]
        %s441 = scalar_lea.vmem [#allocation2], 72
        %v442 = vld [vmem:[%s441] sm:$0xf]
        %v443 = vld [vmem:[%s441 + $0x4] sm:$0xf]
        %v444 = vld [vmem:[%s441 + $0x8] sm:$0xf]
        %v445 = vld [vmem:[%s441 + $0xc] sm:$0xf]
        %v446 = vld [vmem:[%s441 + $0x10] sm:$0xf]
        %v447 = vld [vmem:[%s441 + $0x14] sm:$0xf]
        %v448 = vld [vmem:[%s441 + $0x18] sm:$0xf]
        %v449 = vld [vmem:[%s441 + $0x1c] sm:$0xf]
        %v450 = vld [vmem:[%s441 + $0x20] sm:$0xf]
        %v452 = vunpack.c.l.b16 %v440
        %v453 = vpack.c.b16 %v274, %v452
        %vm454 = vcmask 1046528
        %v455 = vrot.slane %v453, 1
        %v456 = vrot.slane %v277, 1
        %v457 = vsel %vm454, %v455, %v456
        %v467 = vunpack.c.l.b16 %v442
        %v468 = vunpack.c.l.b16 %v443
        %v469 = vunpack.c.l.b16 %v444
        %v470 = vunpack.c.l.b16 %v445
        %v471 = vunpack.c.l.b16 %v446
        %v472 = vunpack.c.l.b16 %v447
        %v473 = vunpack.c.l.b16 %v448
        %v474 = vunpack.c.l.b16 %v449
        %v475 = vunpack.c.l.b16 %v450
        %v476 = vpack.c.b16 %v468, %v467
        %v477 = vpack.c.b16 %v470, %v469
        %v478 = vpack.c.b16 %v472, %v471
        %v479 = vpack.c.b16 %v474, %v473
        %v480 = vpack.c.b16 %v475, %v475
        %v486 = vsel %vm318, %v457, 0
        %v489 = vsel %vm322, %v480, 0
        %491 = vmatprep.subr.bf16.mxu0 0
        %492 = vmatpush1.bf16.msra.mxu0 %v476
        %493 = vmatprep.subr.bf16.mxu0 0
        %494 = vmatpush1.bf16.msra.mxu0 %v477
        %495 = vmatprep.subr.bf16.mxu0 0
        %496 = vmatpush1.bf16.msra.mxu0 %v478
        %497 = vmatprep.subr.bf16.mxu0 0
        %498 = vmatpush1.bf16.msra.mxu0 %v479
        %499 = vmatprep.subr.bf16.mxu0 0
        %500 = vmatpush1.bf16.msra.mxu0 %v489
        %501 = vmatprep.subr.bf16.mxu0 0
        %502 = vmatpush1.bf16.msra.mxu0 0
        %503 = vmatprep.subr.bf16.mxu0 0
        %504 = vmatpush1.bf16.msra.mxu0 0
        %505 = vmatprep.subr.bf16.mxu0 0
        %506 = vmatpush1.bf16.msra.mxu0 0
        %507 = vmatprep.subr.bf16.mxu0 0
        %508 = vmatpush1.bf16.msra.mxu0 0
        %509 = vmatprep.subr.bf16.mxu0 0
        %510 = vmatpush1.bf16.msra.mxu0 0
        %511 = vmatprep.subr.bf16.mxu0 0
        %512 = vmatpush1.bf16.msra.mxu0 0
        %513 = vmatprep.subr.bf16.mxu0 0
        %514 = vmatpush1.bf16.msra.mxu0 0
        %515 = vmatprep.subr.bf16.mxu0 0
        %516 = vmatpush1.bf16.msra.mxu0 0
        %517 = vmatprep.subr.bf16.mxu0 0
        %518 = vmatpush1.bf16.msra.mxu0 0
        %519 = vmatprep.subr.bf16.mxu0 0
        %520 = vmatpush1.bf16.msra.mxu0 0
        %521 = vmatprep.subr.bf16.mxu0 0
        %522 = vmatpush1.bf16.msra.mxu0 0
        %523 = vmatprep.mubr.bf16.mxu0 0
        %524 = vmatmul.mubr.bf16.gmra.mrb[0].mxu0 %v486
        %v525 = vpop.f32.mrb[0].mxu0
        %v526 = vadd.f32 0.0, %v525
        %v527 = vpop.f32.mrb[0].mxu0
        %v528 = vpop.f32.mrb[0].mxu0
        %v529 = vadd.f32 0.0, %v528
        %v530 = vpop.f32.mrb[0].mxu0
        %531 = vdwg.mxu0
        %v532 = vadd.f32 %v434, %v526
        %v533 = vadd.f32 %v437, %v529
        %v534 = vpack.c.bf16 %v533, %v532
        %v536 = vunpack.c.l.b16 %v534
        %v537 = vunpack.c.h.b16 %v534
        %v538 = vpack.c.b16 %v536, %v536
        %v539 = vpack.c.b16 %v537, %v537
        %542 = vst [vmem:[%s227] sm:$0xf] %v538
        %543 = vst [vmem:[%s227 + $0x4] sm:$0xf] %v539
        %v544 = vadd.f32 %v532, %v533
        %v545 = vrot.slane %v544, 4
        %v546 = vadd.f32 %v544, %v545
        %v547 = vrot.slane %v546, 2
        %v548 = vadd.f32 %v546, %v547
        %v549 = vrot.slane %v548, 1
        %v550 = vadd.f32 %v548, %v549
        %v551 = vmul.f32 %v532, %v532
        %v552 = vmul.f32 %v533, %v533
        %v553 = vadd.f32 %v551, %v552
        %v554 = vrot.slane %v553, 4
        %v555 = vadd.f32 %v553, %v554
        %v556 = vrot.slane %v555, 2
        %v557 = vadd.f32 %v555, %v556
        %v558 = vrot.slane %v557, 1
        %v559 = vadd.f32 %v557, %v558
        %560 = vst [vmem:[%s234] sm:$0xff] %v550
        %561 = vst [vmem:[%s241] sm:$0xff] %v559
        %s562 = sand.u32 %s92, 1
        %s563 = scalar_lea.sflag [#allocation4], %s562
        %s564 = sand.u32 %s92, 1
        %s565 = smul.addr %s564, 8
        %s566 = scalar_lea.vmem [#allocation5], %s565
        %s567 = sand.u32 %s23, 1
        %s568 = scalar_lea.sflag [#allocation7], %s567
        %s569 = sand.u32 %s120, 1
        %s570 = smul.addr %s569, 8
        %s571 = scalar_lea.vmem [#allocation6], %s570
        %s572 = sand.u32 %s23, 1
        %s573 = scalar_lea.sflag [#allocation7], %s572
        %s574 = sand.u32 %s148, 1
        %s575 = smul.addr %s574, 8
        %s576 = scalar_lea.vmem [#allocation8], %s575
        // Predicated region
        $region33: #{tpu_custom_call.1} parent=27 // pred_check
          %p577 = pneg %p102
        $region34: #{tpu_custom_call.1} parent=27 // pred_check_branch
          %579 = sbr.rel (%p577) target = $region36
        $region35: #{tpu_custom_call.1} parent=27 // pred_region
          %s581 = ssub.s32 128, 128
          %582 = vsyncadd %s563, %s581
          %s583 = smul.addr %s28, 2
          %s584 = smul.addr %s27, 2
          %s585 = sadd.s32 %s583, %s584
          %s586 = smul.addr %s585, 64
          %s587 = scalar_lea.hbm %s2, %s586
          %s588 = sshll.u32 %s566, 4
          %s589 = int_to_ptr.vmem [resolvable:$true] %s588
          %594 = dma.vmem_to_hbm [thread:$0]  %s589, 128, %s587, %s563, 64, 64, 4
        $region36: #{tpu_custom_call.1} parent=27 // pred_fallthru
          _
        // Predicated region
        $region37: #{tpu_custom_call.1} parent=27 // pred_check
          %p595 = pneg %p130
        $region38: #{tpu_custom_call.1} parent=27 // pred_check_branch
          %597 = sbr.rel (%p595) target = $region40
        $region39: #{tpu_custom_call.1} parent=27 // pred_region
          %s599 = ssub.s32 128, 128
          %600 = vsyncadd %s568, %s599
          %s601 = sadd.s32 %s28, %s27
          %s602 = smul.addr %s601, 128
          %s603 = scalar_lea.hbm %s3, %s602
          %s605 = sshll.u32 %s571, 4
          %s606 = int_to_ptr.vmem [resolvable:$true] %s605
          %608 = dma.vmem_to_hbm [thread:$0]  %s606, 128, %s603, %s568
        $region40: #{tpu_custom_call.1} parent=27 // pred_fallthru
          _
        // Predicated region
        $region41: #{tpu_custom_call.1} parent=27 // pred_check
          %p609 = pneg %p158
        $region42: #{tpu_custom_call.1} parent=27 // pred_check_branch
          %611 = sbr.rel (%p609) target = $region44
        $region43: #{tpu_custom_call.1} parent=27 // pred_region
          %s613 = ssub.s32 128, 128
          %614 = vsyncadd %s573, %s613
          %s615 = sadd.s32 %s28, %s27
          %s616 = smul.addr %s615, 128
          %s617 = scalar_lea.hbm %s4, %s616
          %s619 = sshll.u32 %s576, 4
          %s620 = int_to_ptr.vmem [resolvable:$true] %s619
          %622 = dma.vmem_to_hbm [thread:$0]  %s620, 128, %s617, %s573
        $region44: #{tpu_custom_call.1} parent=27 // pred_fallthru
          _
      $region28: #{tpu_custom_call.1} parent=5 // pred_fallthru
        _
      %p623 = scmp.le.s32.totalorder 2, %s18
      // Predicated region
      $region45: #{tpu_custom_call.1} parent=5 // pred_check
        %p624 = pneg %p623
      $region46: #{tpu_custom_call.1} parent=5 // pred_check_branch
        %626 = sbr.rel (%p624) target = $region48
      $region47: #{tpu_custom_call.1} parent=5 // pred_region
        %s627 = ssub.s32 %s18, 2
        // Predicated region
        $region49: #{tpu_custom_call.1} parent=47 // pred_check
          %p628 = pneg %p108
        $region50: #{tpu_custom_call.1} parent=47 // pred_check_branch
          %630 = sbr.rel (%p628) target = $region52
        $region51: #{tpu_custom_call.1} parent=47 // pred_region
          %s631 = sand.u32 %s93, 1
          %s632 = scalar_lea.sflag [#allocation4], %s631
          %s633 = sand.u32 %s93, 1
          %s634 = smul.addr %s633, 8
          %s635 = scalar_lea.vmem [#allocation5], %s634
          %636 = dma.done %s632, 128
        $region52: #{tpu_custom_call.1} parent=47 // pred_fallthru
          _
        // Predicated region
        $region53: #{tpu_custom_call.1} parent=47 // pred_check
          %p637 = pneg %p136
        $region54: #{tpu_custom_call.1} parent=47 // pred_check_branch
          %639 = sbr.rel (%p637) target = $region56
        $region55: #{tpu_custom_call.1} parent=47 // pred_region
          %s640 = sand.u32 %s24, 1
          %s641 = scalar_lea.sflag [#allocation7], %s640
          %s642 = sand.u32 %s121, 1
          %s643 = smul.addr %s642, 8
          %s644 = scalar_lea.vmem [#allocation6], %s643
          %645 = dma.done %s641, 128
        $region56: #{tpu_custom_call.1} parent=47 // pred_fallthru
          _
        // Predicated region
        $region57: #{tpu_custom_call.1} parent=47 // pred_check
          %p646 = pneg %p164
        $region58: #{tpu_custom_call.1} parent=47 // pred_check_branch
          %648 = sbr.rel (%p646) target = $region60
        $region59: #{tpu_custom_call.1} parent=47 // pred_region
          %s649 = sand.u32 %s24, 1
          %s650 = scalar_lea.sflag [#allocation7], %s649
          %s651 = sand.u32 %s149, 1
          %s652 = smul.addr %s651, 8
          %s653 = scalar_lea.vmem [#allocation8], %s652
          %654 = dma.done %s650, 128
        $region60: #{tpu_custom_call.1} parent=47 // pred_fallthru
          _
      $region48: #{tpu_custom_call.1} parent=5 // pred_fallthru
        _
    $region6: #{tpu_custom_call.1} parent=1 // loop_footer
      %s22 = sadd.s32 1, %s18
    $region7: #{tpu_custom_call.1} parent=1 // loop_footer_branch
      %17 = sbr.rel target = $region3
    $region8: #{tpu_custom_call.1} parent=1 // loop_exit
      _
    %655 = vsyncpa [#allocation3], 1
    %s656 = scalar_lea.sflag [#allocation3], 1
    %657 = vsyncpa %s656, 1
    %658 = vsyncpa [#allocation4], 1
    %s659 = scalar_lea.sflag [#allocation4], 1
    %660 = vsyncpa %s659, 1
    %661 = vsyncpa [#allocation7], 1
    %s662 = scalar_lea.sflag [#allocation7], 1
    %663 = vsyncpa %s662, 1

</llo_original>
